<compile_context>
chip_gen: v7x
topology: tpu7x:2x2x1
jax: 0.10.0
libtpu: 0.0.40
codegen_flags: <defaults>
</compile_context>

<pallas_src>
import jax
import jax.numpy as jnp
from jax.experimental import pallas as pl
from jax.experimental.pallas import tpu as pltpu


def _make_block_kernel(S, H, W, NB, RQ):
    """Kernel over one flattened (NB*H, W) image block, all S scales per step."""
    R = NB * H

    def rsum(x):
        # Reduce an (R, W) f32 quantity to a vreg-aligned (RQ, W) lane partial.
        if RQ == 8:
            if R == 8:
                return x
            return jnp.sum(x.reshape(R // 8, 8, W), axis=0)
        return jnp.sum(x, axis=0, keepdims=True)

    def kernel(*refs):
        pred_refs = refs[:S]        # S x (R, W) prediction tiles
        gt_ref = refs[S]            # (R, W) groundtruth tile
        out_ref = refs[S + 1]       # ((1 + 3*S) * RQ, W) per-block partial sums

        gt = gt_ref[...].astype(jnp.float32)
        mask = jnp.logical_not(jnp.isnan(gt))
        maskf = mask.astype(jnp.float32)

        # Edge masks implementing conv2d zero padding (padding=1) on the flattened
        # (NB*H, W) layout.  Row masks also zero rows rolled across image borders.
        # Built directly (no concatenate copies); grid-invariant by construction.
        col = jax.lax.broadcasted_iota(jnp.int32, (R, W), 1)
        not_first_col = (col > 0).astype(jnp.float32)
        not_last_col = (col < W - 1).astype(jnp.float32)
        row = jax.lax.broadcasted_iota(jnp.int32, (R, W), 0)
        if NB == 1:
            row_in_img = row
        elif (H & (H - 1)) == 0:                 # power-of-two image height
            row_in_img = jnp.bitwise_and(row, H - 1)
        else:
            row_in_img = row % H
        not_first_row = (row_in_img > 0).astype(jnp.float32)
        not_last_row = (row_in_img < H - 1).astype(jnp.float32)

        # Valid-pixel count (shared by all scales).
        out_ref[0:RQ, :] = rsum(maskf)

        for s in range(S):
            pred = pred_refs[s][...].astype(jnp.float32)
            res = jnp.where(mask, pred - gt, jnp.float32(0.0))

            # Horizontal neighbours via lane rotation (zero-padded borders).
            left = pltpu.roll(res, shift=1, axis=1) * not_first_col        # res[., x-1]
            right = pltpu.roll(res, shift=W - 1, axis=1) * not_last_col    # res[., x+1]
            dx = left - right                 # horizontal [1, 0, -1]
            sm = left + 2.0 * res + right     # horizontal [1, 2,  1]

            # Vertical neighbours via sublane rotation (masks give zero padding and
            # prevent bleed across image boundaries in the flattened layout).
            dx_up = pltpu.roll(dx, shift=1, axis=0) * not_first_row        # dx[y-1, .]
            dx_dn = pltpu.roll(dx, shift=R - 1, axis=0) * not_last_row     # dx[y+1, .]
            sm_up = pltpu.roll(sm, shift=1, axis=0) * not_first_row
            sm_dn = pltpu.roll(sm, shift=R - 1, axis=0) * not_last_row

            # TODO(synk): optional MXU offload of the vertical stencil (banded (R,R)
            # matmul) would cut ~30% of VALU work at a bf16 rounding cost.
            gx = dx_up + 2.0 * dx + dx_dn     # Sobel X = [1,2,1]^T * [1,0,-1]
            gy = sm_up - sm_dn                # Sobel Y = [1,0,-1]^T * [1,2,1]
            grad = (jnp.abs(gx) + jnp.abs(gy)) * maskf

            base = (1 + 3 * s) * RQ
            out_ref[base:base + RQ, :] = rsum(res)
            out_ref[base + RQ:base + 2 * RQ, :] = rsum(res * res)
            out_ref[base + 2 * RQ:base + 3 * RQ, :] = rsum(grad)

    return kernel


def _vmem_limit_bytes():
    """Derive the scoped-VMEM request from the hardware (v7x: 64 MiB/TC)."""
    cap = 128 * 1024 * 1024
    try:
        cap = int(pltpu.get_tpu_info().vmem_capacity_bytes)
    except Exception:
        pass
    # ~45% of per-core capacity: ~29 MiB on v7x, ~58 MiB on v5e/v6e.
    return max(16 * 1024 * 1024, min(int(cap * 0.45), 96 * 1024 * 1024))


def _choose_images_per_block(N, H, W, S, block_budget_bytes):
    """Images per block: fits the VMEM budget, 8-aligned rows, >=512 rows if
    possible, and >=2 blocks so both v7x TensorCores get work."""
    # Per-image f32 worst case: double-buffered (S+1) input tiles + ~12 temporaries.
    per_img = H * W * 4 * (2 * (S + 1) + 12)
    cap = max(1, block_budget_bytes // per_img)
    valid = [d for d in range(1, N + 1)
             if N % d == 0 and d <= cap and ((d * H) % 8 == 0 or d == N)]
    if not valid:
        # Even one image exceeds the budget; take the smallest legal block.
        # TODO(synk): add a lane-axis (W) tiling fallback with a 1-column halo for
        # very large H*W maps that do not fit VMEM one image at a time.
        return 1 if (H % 8 == 0 or N == 1) else N
    big_enough = [d for d in valid if d * H >= 512]
    nb = min(big_enough) if big_enough else max(valid)
    if N // nb < 2:
        multi = [d for d in valid if N // d >= 2]
        if multi:
            nb = max(multi)
    return nb


def _loss_partial_sums(preds2d, gt2d, S, H, W, NB, vmem_limit):
    """preds2d: S arrays (N*H, W); gt2d: (N*H, W) -> ((n_blocks, Q*RQ, W), RQ)."""
    R = NB * H
    n_blocks = gt2d.shape[0] // R
    RQ = 8 if R % 8 == 0 else 1
    Q = 1 + 3 * S
    kernel = _make_block_kernel(S, H, W, NB, RQ)
    in_specs = [pl.BlockSpec((R, W), lambda n: (n, 0)) for _ in range(S + 1)]
    out_spec = pl.BlockSpec((None, Q * RQ, W), lambda n: (n, 0, 0))
    out = pl.pallas_call(
        kernel,
        out_shape=jax.ShapeDtypeStruct((n_blocks, Q * RQ, W), jnp.float32),
        grid_spec=pltpu.PrefetchScalarGridSpec(
            num_scalar_prefetch=0,
            grid=(n_blocks,),
            in_specs=in_specs,
            out_specs=out_spec,
        ),
        compiler_params=pltpu.CompilerParams(
            # Blocks are fully independent (no carried state) -> megacore on v7x.
            dimension_semantics=("parallel",),
            vmem_limit_bytes=vmem_limit,
        ),
    )(*preds2d, gt2d)
    return out, RQ


def total_loss_pallas(predicted, groundtruth, alpha=0.5,
                      scale_weights=(1.0, 1.0, 1.0, 1.0)):
    """predicted: tuple of (N,1,H,W); groundtruth: (N,1,H,W).  Returns scalar."""
    S = len(predicted)
    N, C, H, W = groundtruth.shape
    assert C == 1

    # Free reshapes (merge contiguous leading dims) — no stack, no dtype cast here;
    # bf16 inputs stay bf16 in HBM and are upcast inside the kernel after the DMA.
    preds2d = [jnp.reshape(p, (N * H, W)) for p in predicted]
    gt2d = jnp.reshape(groundtruth, (N * H, W))

    vmem_limit = _vmem_limit_bytes()
    NB = _choose_images_per_block(N, H, W, S, int(vmem_limit * 0.8))

    partials, RQ = _loss_partial_sums(preds2d, gt2d, S, H, W, NB, vmem_limit)
    n_blocks = partials.shape[0]
    Q = 1 + 3 * S
    # Tiny cross-block / sublane / lane reduction in the wrapper.
    sums = jnp.sum(partials.reshape(n_blocks, Q, RQ, W), axis=(0, 2, 3))   # (Q,)

    cnt = sums[0]
    sres = sums[1::3]
    sres2 = sums[2::3]
    sgrad = sums[3::3]

    si = sres2 / cnt - (sres * sres) / (cnt * cnt)      # ScaleInvariant per scale
    gm = sgrad / cnt                                    # GradientMatching per scale
    w = jnp.asarray(scale_weights, jnp.float32)
    return jnp.sum(w * si) + jnp.float32(alpha) * jnp.sum(w * gm)


def total_loss_ref(predicted, groundtruth, alpha=0.5,
                   scale_weights=(1.0, 1.0, 1.0, 1.0)):
    """Pure-JAX reference mirroring the PyTorch code (for verification)."""
    gt = jnp.squeeze(groundtruth, axis=1).astype(jnp.float32)
    mask = jnp.logical_not(jnp.isnan(gt))
    maskf = mask.astype(jnp.float32)
    n = jnp.sum(maskf)
    total_si = 0.0
    total_gm = 0.0
    for w_s, p in zip(scale_weights, predicted):
        pm = jnp.squeeze(p, axis=1).astype(jnp.float32)
        res = jnp.where(mask, pm - gt, 0.0)
        si = jnp.sum(res * res) / n - jnp.sum(res) ** 2 / (n * n)
        padded = jnp.pad(res, ((0, 0), (1, 1), (1, 1)))
        gx = (padded[:, 0:-2, 0:-2] - padded[:, 0:-2, 2:]
              + 2.0 * padded[:, 1:-1, 0:-2] - 2.0 * padded[:, 1:-1, 2:]
              + padded[:, 2:, 0:-2] - padded[:, 2:, 2:])
        gy = (padded[:, 0:-2, 0:-2] + 2.0 * padded[:, 0:-2, 1:-1] + padded[:, 0:-2, 2:]
              - padded[:, 2:, 0:-2] - 2.0 * padded[:, 2:, 1:-1] - padded[:, 2:, 2:])
        gm = jnp.sum((jnp.abs(gx) + jnp.abs(gy)) * maskf) / n
        total_si = total_si + w_s * si
        total_gm = total_gm + w_s * gm
    return total_si + alpha * total_gm


if __name__ == "__main__":
    key = jax.random.PRNGKey(0)
    S, N, H, W = 4, 2, 16, 128   # W=128 keeps the lane axis dense on TPU
    keys = jax.random.split(key, S + 2)

    predicted = tuple(
        jax.random.normal(keys[i], (N, 1, H, W), jnp.float32) for i in range(S)
    )
    gt = jax.random.normal(keys[S], (N, 1, H, W), jnp.float32)
    # inject NaNs into the groundtruth to exercise the masking path
    nan_mask = jax.random.uniform(keys[S + 1], (N, 1, H, W)) < 0.1
    gt = jnp.where(nan_mask, jnp.float32(jnp.nan), gt)

    out = total_loss_pallas(predicted, gt, alpha=0.5,
                            scale_weights=(1.0, 1.0, 1.0, 1.0))
    out = jax.block_until_ready(out)

    ref = total_loss_ref(predicted, gt, alpha=0.5,
                         scale_weights=(1.0, 1.0, 1.0, 1.0))
    assert jnp.allclose(out, ref, rtol=1e-4, atol=1e-5), (float(out), float(ref))
    print("KERNEL_OK")
</pallas_src>

<mosaic_0001>
module attributes {stable_mosaic.version = 11 : i64} {
  func.func @kernel(%arg0: i32, %arg1: memref<16x128xf32, #tpu.memory_space<vmem>>, %arg2: memref<16x128xf32, #tpu.memory_space<vmem>>, %arg3: memref<16x128xf32, #tpu.memory_space<vmem>>, %arg4: memref<16x128xf32, #tpu.memory_space<vmem>>, %arg5: memref<16x128xf32, #tpu.memory_space<vmem>>, %arg6: memref<1x104x128xf32, #tpu.memory_space<vmem>>) attributes {dimension_semantics = [#tpu.dimension_semantics<parallel>], iteration_bounds = array<i64: 2>, scalar_prefetch = 0 : i64, scratch_operands = 0 : i64, tpu.core_type = #tpu.core_type<tc>, window_params = [{transform_indices = @transform_0, window_bounds = array<i64: 16, 128>}, {transform_indices = @transform_1, window_bounds = array<i64: 16, 128>}, {transform_indices = @transform_2, window_bounds = array<i64: 16, 128>}, {transform_indices = @transform_3, window_bounds = array<i64: 16, 128>}, {transform_indices = @transform_4, window_bounds = array<i64: 16, 128>}, {transform_indices = @transform_5, window_bounds = array<i64: 1, 104, 128>}]} {
    %c0 = arith.constant 0 : index
    %c0_0 = arith.constant 0 : index
    %0 = vector.load %arg5[%c0, %c0_0] : memref<16x128xf32, #tpu.memory_space<vmem>>, vector<16x128xf32>
    %1 = arith.cmpf one, %0, %0 : vector<16x128xf32>
    %cst = arith.constant dense<true> : vector<16x128xi1>
    %2 = arith.xori %1, %cst : vector<16x128xi1>
    %3 = arith.extui %2 : vector<16x128xi1> to vector<16x128xi32>
    %4 = arith.sitofp %3 : vector<16x128xi32> to vector<16x128xf32>
    %5 = tpu.iota {dimensions = array<i32: 1>} : vector<16x128xi32>
    %c0_i32 = arith.constant 0 : i32
    %6 = vector.broadcast %c0_i32 : i32 to vector<16x128xi32>
    %7 = arith.cmpi sgt, %5, %6 : vector<16x128xi32>
    %8 = arith.extui %7 : vector<16x128xi1> to vector<16x128xi32>
    %9 = arith.sitofp %8 : vector<16x128xi32> to vector<16x128xf32>
    %c127_i32 = arith.constant 127 : i32
    %10 = vector.broadcast %c127_i32 : i32 to vector<16x128xi32>
    %11 = arith.cmpi slt, %5, %10 : vector<16x128xi32>
    %12 = arith.extui %11 : vector<16x128xi1> to vector<16x128xi32>
    %13 = arith.sitofp %12 : vector<16x128xi32> to vector<16x128xf32>
    %14 = tpu.iota {dimensions = array<i32: 0>} : vector<16x128xi32>
    %c0_i32_1 = arith.constant 0 : i32
    %15 = vector.broadcast %c0_i32_1 : i32 to vector<16x128xi32>
    %16 = arith.cmpi sgt, %14, %15 : vector<16x128xi32>
    %17 = arith.extui %16 : vector<16x128xi1> to vector<16x128xi32>
    %18 = arith.sitofp %17 : vector<16x128xi32> to vector<16x128xf32>
    %c15_i32 = arith.constant 15 : i32
    %19 = vector.broadcast %c15_i32 : i32 to vector<16x128xi32>
    %20 = arith.cmpi slt, %14, %19 : vector<16x128xi32>
    %21 = arith.extui %20 : vector<16x128xi1> to vector<16x128xi32>
    %22 = arith.sitofp %21 : vector<16x128xi32> to vector<16x128xf32>
    %23 = vector.shape_cast %4 : vector<16x128xf32> to vector<2x8x128xf32>
    %cst_2 = arith.constant dense<0.000000e+00> : vector<8x128xf32>
    %24 = vector.multi_reduction <add>, %23, %cst_2 [0] : vector<2x8x128xf32> to vector<8x128xf32>
    %c0_3 = arith.constant 0 : index
    %c0_4 = arith.constant 0 : index
    %c0_5 = arith.constant 0 : index
    %25 = vector.load %arg6[%c0_3, %c0_4, %c0_5] : memref<1x104x128xf32, #tpu.memory_space<vmem>>, vector<1x8x128xf32>
    %26 = vector.shape_cast %25 : vector<1x8x128xf32> to vector<8x128xf32>
    %27 = vector.shape_cast %24 : vector<8x128xf32> to vector<1x8x128xf32>
    tpu.vector_store %arg6[%c0_3, %c0_4, %c0_5], %27 {strides = array<i32>} : memref<1x104x128xf32, #tpu.memory_space<vmem>>, vector<1x8x128xf32>,
    %c0_6 = arith.constant 0 : index
    %c0_7 = arith.constant 0 : index
    %28 = vector.load %arg1[%c0_6, %c0_7] : memref<16x128xf32, #tpu.memory_space<vmem>>, vector<16x128xf32>
    %29 = arith.subf %28, %0 : vector<16x128xf32>
    %cst_8 = arith.constant 0.000000e+00 : f32
    %30 = vector.broadcast %cst_8 : f32 to vector<16x128xf32>
    %31 = arith.select %2, %29, %30 : vector<16x128xi1>, vector<16x128xf32>
    %c1_i32 = arith.constant 1 : i32
    %32 = tpu.dynamic_rotate %31 by %c1_i32 dim 1 : vector<16x128xf32>, i32 -> vector<16x128xf32>
    %33 = arith.mulf %32, %9 : vector<16x128xf32>
    %c127_i32_9 = arith.constant 127 : i32
    %34 = tpu.dynamic_rotate %31 by %c127_i32_9 dim 1 : vector<16x128xf32>, i32 -> vector<16x128xf32>
    %35 = arith.mulf %34, %13 : vector<16x128xf32>
    %36 = arith.subf %33, %35 : vector<16x128xf32>
    %cst_10 = arith.constant 2.000000e+00 : f32
    %37 = vector.broadcast %cst_10 : f32 to vector<16x128xf32>
    %38 = arith.mulf %37, %31 : vector<16x128xf32>
    %39 = arith.addf %33, %38 : vector<16x128xf32>
    %40 = arith.addf %39, %35 : vector<16x128xf32>
    %c1_i32_11 = arith.constant 1 : i32
    %41 = tpu.dynamic_rotate %36 by %c1_i32_11 dim 0 : vector<16x128xf32>, i32 -> vector<16x128xf32>
    %42 = arith.mulf %41, %18 : vector<16x128xf32>
    %c15_i32_12 = arith.constant 15 : i32
    %43 = tpu.dynamic_rotate %36 by %c15_i32_12 dim 0 : vector<16x128xf32>, i32 -> vector<16x128xf32>
    %44 = arith.mulf %43, %22 : vector<16x128xf32>
    %c1_i32_13 = arith.constant 1 : i32
    %45 = tpu.dynamic_rotate %40 by %c1_i32_13 dim 0 : vector<16x128xf32>, i32 -> vector<16x128xf32>
    %46 = arith.mulf %45, %18 : vector<16x128xf32>
    %c15_i32_14 = arith.constant 15 : i32
    %47 = tpu.dynamic_rotate %40 by %c15_i32_14 dim 0 : vector<16x128xf32>, i32 -> vector<16x128xf32>
    %48 = arith.mulf %47, %22 : vector<16x128xf32>
    %cst_15 = arith.constant 2.000000e+00 : f32
    %49 = vector.broadcast %cst_15 : f32 to vector<16x128xf32>
    %50 = arith.mulf %49, %36 : vector<16x128xf32>
    %51 = arith.addf %42, %50 : vector<16x128xf32>
    %52 = arith.addf %51, %44 : vector<16x128xf32>
    %53 = arith.subf %46, %48 : vector<16x128xf32>
    %54 = math.absf %52 : vector<16x128xf32>
    %55 = math.absf %53 : vector<16x128xf32>
    %56 = arith.addf %54, %55 : vector<16x128xf32>
    %57 = arith.mulf %56, %4 : vector<16x128xf32>
    %58 = vector.shape_cast %31 : vector<16x128xf32> to vector<2x8x128xf32>
    %cst_16 = arith.constant dense<0.000000e+00> : vector<8x128xf32>
    %59 = vector.multi_reduction <add>, %58, %cst_16 [0] : vector<2x8x128xf32> to vector<8x128xf32>
    %c0_17 = arith.constant 0 : index
    %c8 = arith.constant 8 : index
    %c0_18 = arith.constant 0 : index
    %60 = vector.load %arg6[%c0_17, %c8, %c0_18] : memref<1x104x128xf32, #tpu.memory_space<vmem>>, vector<1x8x128xf32>
    %61 = vector.shape_cast %60 : vector<1x8x128xf32> to vector<8x128xf32>
    %62 = vector.shape_cast %59 : vector<8x128xf32> to vector<1x8x128xf32>
    tpu.vector_store %arg6[%c0_17, %c8, %c0_18], %62 {strides = array<i32>} : memref<1x104x128xf32, #tpu.memory_space<vmem>>, vector<1x8x128xf32>,
    %63 = arith.mulf %31, %31 : vector<16x128xf32>
    %64 = vector.shape_cast %63 : vector<16x128xf32> to vector<2x8x128xf32>
    %cst_19 = arith.constant dense<0.000000e+00> : vector<8x128xf32>
    %65 = vector.multi_reduction <add>, %64, %cst_19 [0] : vector<2x8x128xf32> to vector<8x128xf32>
    %c0_20 = arith.constant 0 : index
    %c16 = arith.constant 16 : index
    %c0_21 = arith.constant 0 : index
    %66 = vector.load %arg6[%c0_20, %c16, %c0_21] : memref<1x104x128xf32, #tpu.memory_space<vmem>>, vector<1x8x128xf32>
    %67 = vector.shape_cast %66 : vector<1x8x128xf32> to vector<8x128xf32>
    %68 = vector.shape_cast %65 : vector<8x128xf32> to vector<1x8x128xf32>
    tpu.vector_store %arg6[%c0_20, %c16, %c0_21], %68 {strides = array<i32>} : memref<1x104x128xf32, #tpu.memory_space<vmem>>, vector<1x8x128xf32>,
    %69 = vector.shape_cast %57 : vector<16x128xf32> to vector<2x8x128xf32>
    %cst_22 = arith.constant dense<0.000000e+00> : vector<8x128xf32>
    %70 = vector.multi_reduction <add>, %69, %cst_22 [0] : vector<2x8x128xf32> to vector<8x128xf32>
    %c0_23 = arith.constant 0 : index
    %c24 = arith.constant 24 : index
    %c0_24 = arith.constant 0 : index
    %71 = vector.load %arg6[%c0_23, %c24, %c0_24] : memref<1x104x128xf32, #tpu.memory_space<vmem>>, vector<1x8x128xf32>
    %72 = vector.shape_cast %71 : vector<1x8x128xf32> to vector<8x128xf32>
    %73 = vector.shape_cast %70 : vector<8x128xf32> to vector<1x8x128xf32>
    tpu.vector_store %arg6[%c0_23, %c24, %c0_24], %73 {strides = array<i32>} : memref<1x104x128xf32, #tpu.memory_space<vmem>>, vector<1x8x128xf32>,
    %c0_25 = arith.constant 0 : index
    %c0_26 = arith.constant 0 : index
    %74 = vector.load %arg2[%c0_25, %c0_26] : memref<16x128xf32, #tpu.memory_space<vmem>>, vector<16x128xf32>
    %75 = arith.subf %74, %0 : vector<16x128xf32>
    %cst_27 = arith.constant 0.000000e+00 : f32
    %76 = vector.broadcast %cst_27 : f32 to vector<16x128xf32>
    %77 = arith.select %2, %75, %76 : vector<16x128xi1>, vector<16x128xf32>
    %c1_i32_28 = arith.constant 1 : i32
    %78 = tpu.dynamic_rotate %77 by %c1_i32_28 dim 1 : vector<16x128xf32>, i32 -> vector<16x128xf32>
    %79 = arith.mulf %78, %9 : vector<16x128xf32>
    %c127_i32_29 = arith.constant 127 : i32
    %80 = tpu.dynamic_rotate %77 by %c127_i32_29 dim 1 : vector<16x128xf32>, i32 -> vector<16x128xf32>
    %81 = arith.mulf %80, %13 : vector<16x128xf32>
    %82 = arith.subf %79, %81 : vector<16x128xf32>
    %cst_30 = arith.constant 2.000000e+00 : f32
    %83 = vector.broadcast %cst_30 : f32 to vector<16x128xf32>
    %84 = arith.mulf %83, %77 : vector<16x128xf32>
    %85 = arith.addf %79, %84 : vector<16x128xf32>
    %86 = arith.addf %85, %81 : vector<16x128xf32>
    %c1_i32_31 = arith.constant 1 : i32
    %87 = tpu.dynamic_rotate %82 by %c1_i32_31 dim 0 : vector<16x128xf32>, i32 -> vector<16x128xf32>
    %88 = arith.mulf %87, %18 : vector<16x128xf32>
    %c15_i32_32 = arith.constant 15 : i32
    %89 = tpu.dynamic_rotate %82 by %c15_i32_32 dim 0 : vector<16x128xf32>, i32 -> vector<16x128xf32>
    %90 = arith.mulf %89, %22 : vector<16x128xf32>
    %c1_i32_33 = arith.constant 1 : i32
    %91 = tpu.dynamic_rotate %86 by %c1_i32_33 dim 0 : vector<16x128xf32>, i32 -> vector<16x128xf32>
    %92 = arith.mulf %91, %18 : vector<16x128xf32>
    %c15_i32_34 = arith.constant 15 : i32
    %93 = tpu.dynamic_rotate %86 by %c15_i32_34 dim 0 : vector<16x128xf32>, i32 -> vector<16x128xf32>
    %94 = arith.mulf %93, %22 : vector<16x128xf32>
    %cst_35 = arith.constant 2.000000e+00 : f32
    %95 = vector.broadcast %cst_35 : f32 to vector<16x128xf32>
    %96 = arith.mulf %95, %82 : vector<16x128xf32>
    %97 = arith.addf %88, %96 : vector<16x128xf32>
    %98 = arith.addf %97, %90 : vector<16x128xf32>
    %99 = arith.subf %92, %94 : vector<16x128xf32>
    %100 = math.absf %98 : vector<16x128xf32>
    %101 = math.absf %99 : vector<16x128xf32>
    %102 = arith.addf %100, %101 : vector<16x128xf32>
    %103 = arith.mulf %102, %4 : vector<16x128xf32>
    %104 = vector.shape_cast %77 : vector<16x128xf32> to vector<2x8x128xf32>
    %cst_36 = arith.constant dense<0.000000e+00> : vector<8x128xf32>
    %105 = vector.multi_reduction <add>, %104, %cst_36 [0] : vector<2x8x128xf32> to vector<8x128xf32>
    %c0_37 = arith.constant 0 : index
    %c32 = arith.constant 32 : index
    %c0_38 = arith.constant 0 : index
    %106 = vector.load %arg6[%c0_37, %c32, %c0_38] : memref<1x104x128xf32, #tpu.memory_space<vmem>>, vector<1x8x128xf32>
    %107 = vector.shape_cast %106 : vector<1x8x128xf32> to vector<8x128xf32>
    %108 = vector.shape_cast %105 : vector<8x128xf32> to vector<1x8x128xf32>
    tpu.vector_store %arg6[%c0_37, %c32, %c0_38], %108 {strides = array<i32>} : memref<1x104x128xf32, #tpu.memory_space<vmem>>, vector<1x8x128xf32>,
    %109 = arith.mulf %77, %77 : vector<16x128xf32>
    %110 = vector.shape_cast %109 : vector<16x128xf32> to vector<2x8x128xf32>
    %cst_39 = arith.constant dense<0.000000e+00> : vector<8x128xf32>
    %111 = vector.multi_reduction <add>, %110, %cst_39 [0] : vector<2x8x128xf32> to vector<8x128xf32>
    %c0_40 = arith.constant 0 : index
    %c40 = arith.constant 40 : index
    %c0_41 = arith.constant 0 : index
    %112 = vector.load %arg6[%c0_40, %c40, %c0_41] : memref<1x104x128xf32, #tpu.memory_space<vmem>>, vector<1x8x128xf32>
    %113 = vector.shape_cast %112 : vector<1x8x128xf32> to vector<8x128xf32>
    %114 = vector.shape_cast %111 : vector<8x128xf32> to vector<1x8x128xf32>
    tpu.vector_store %arg6[%c0_40, %c40, %c0_41], %114 {strides = array<i32>} : memref<1x104x128xf32, #tpu.memory_space<vmem>>, vector<1x8x128xf32>,
    %115 = vector.shape_cast %103 : vector<16x128xf32> to vector<2x8x128xf32>
    %cst_42 = arith.constant dense<0.000000e+00> : vector<8x128xf32>
    %116 = vector.multi_reduction <add>, %115, %cst_42 [0] : vector<2x8x128xf32> to vector<8x128xf32>
    %c0_43 = arith.constant 0 : index
    %c48 = arith.constant 48 : index
    %c0_44 = arith.constant 0 : index
    %117 = vector.load %arg6[%c0_43, %c48, %c0_44] : memref<1x104x128xf32, #tpu.memory_space<vmem>>, vector<1x8x128xf32>
    %118 = vector.shape_cast %117 : vector<1x8x128xf32> to vector<8x128xf32>
    %119 = vector.shape_cast %116 : vector<8x128xf32> to vector<1x8x128xf32>
    tpu.vector_store %arg6[%c0_43, %c48, %c0_44], %119 {strides = array<i32>} : memref<1x104x128xf32, #tpu.memory_space<vmem>>, vector<1x8x128xf32>,
    %c0_45 = arith.constant 0 : index
    %c0_46 = arith.constant 0 : index
    %120 = vector.load %arg3[%c0_45, %c0_46] : memref<16x128xf32, #tpu.memory_space<vmem>>, vector<16x128xf32>
    %121 = arith.subf %120, %0 : vector<16x128xf32>
    %cst_47 = arith.constant 0.000000e+00 : f32
    %122 = vector.broadcast %cst_47 : f32 to vector<16x128xf32>
    %123 = arith.select %2, %121, %122 : vector<16x128xi1>, vector<16x128xf32>
    %c1_i32_48 = arith.constant 1 : i32
    %124 = tpu.dynamic_rotate %123 by %c1_i32_48 dim 1 : vector<16x128xf32>, i32 -> vector<16x128xf32>
    %125 = arith.mulf %124, %9 : vector<16x128xf32>
    %c127_i32_49 = arith.constant 127 : i32
    %126 = tpu.dynamic_rotate %123 by %c127_i32_49 dim 1 : vector<16x128xf32>, i32 -> vector<16x128xf32>
    %127 = arith.mulf %126, %13 : vector<16x128xf32>
    %128 = arith.subf %125, %127 : vector<16x128xf32>
    %cst_50 = arith.constant 2.000000e+00 : f32
    %129 = vector.broadcast %cst_50 : f32 to vector<16x128xf32>
    %130 = arith.mulf %129, %123 : vector<16x128xf32>
    %131 = arith.addf %125, %130 : vector<16x128xf32>
    %132 = arith.addf %131, %127 : vector<16x128xf32>
    %c1_i32_51 = arith.constant 1 : i32
    %133 = tpu.dynamic_rotate %128 by %c1_i32_51 dim 0 : vector<16x128xf32>, i32 -> vector<16x128xf32>
    %134 = arith.mulf %133, %18 : vector<16x128xf32>
    %c15_i32_52 = arith.constant 15 : i32
    %135 = tpu.dynamic_rotate %128 by %c15_i32_52 dim 0 : vector<16x128xf32>, i32 -> vector<16x128xf32>
    %136 = arith.mulf %135, %22 : vector<16x128xf32>
    %c1_i32_53 = arith.constant 1 : i32
    %137 = tpu.dynamic_rotate %132 by %c1_i32_53 dim 0 : vector<16x128xf32>, i32 -> vector<16x128xf32>
    %138 = arith.mulf %137, %18 : vector<16x128xf32>
    %c15_i32_54 = arith.constant 15 : i32
    %139 = tpu.dynamic_rotate %132 by %c15_i32_54 dim 0 : vector<16x128xf32>, i32 -> vector<16x128xf32>
    %140 = arith.mulf %139, %22 : vector<16x128xf32>
    %cst_55 = arith.constant 2.000000e+00 : f32
    %141 = vector.broadcast %cst_55 : f32 to vector<16x128xf32>
    %142 = arith.mulf %141, %128 : vector<16x128xf32>
    %143 = arith.addf %134, %142 : vector<16x128xf32>
    %144 = arith.addf %143, %136 : vector<16x128xf32>
    %145 = arith.subf %138, %140 : vector<16x128xf32>
    %146 = math.absf %144 : vector<16x128xf32>
    %147 = math.absf %145 : vector<16x128xf32>
    %148 = arith.addf %146, %147 : vector<16x128xf32>
    %149 = arith.mulf %148, %4 : vector<16x128xf32>
    %150 = vector.shape_cast %123 : vector<16x128xf32> to vector<2x8x128xf32>
    %cst_56 = arith.constant dense<0.000000e+00> : vector<8x128xf32>
    %151 = vector.multi_reduction <add>, %150, %cst_56 [0] : vector<2x8x128xf32> to vector<8x128xf32>
    %c0_57 = arith.constant 0 : index
    %c56 = arith.constant 56 : index
    %c0_58 = arith.constant 0 : index
    %152 = vector.load %arg6[%c0_57, %c56, %c0_58] : memref<1x104x128xf32, #tpu.memory_space<vmem>>, vector<1x8x128xf32>
    %153 = vector.shape_cast %152 : vector<1x8x128xf32> to vector<8x128xf32>
    %154 = vector.shape_cast %151 : vector<8x128xf32> to vector<1x8x128xf32>
    tpu.vector_store %arg6[%c0_57, %c56, %c0_58], %154 {strides = array<i32>} : memref<1x104x128xf32, #tpu.memory_space<vmem>>, vector<1x8x128xf32>,
    %155 = arith.mulf %123, %123 : vector<16x128xf32>
    %156 = vector.shape_cast %155 : vector<16x128xf32> to vector<2x8x128xf32>
    %cst_59 = arith.constant dense<0.000000e+00> : vector<8x128xf32>
    %157 = vector.multi_reduction <add>, %156, %cst_59 [0] : vector<2x8x128xf32> to vector<8x128xf32>
    %c0_60 = arith.constant 0 : index
    %c64 = arith.constant 64 : index
    %c0_61 = arith.constant 0 : index
    %158 = vector.load %arg6[%c0_60, %c64, %c0_61] : memref<1x104x128xf32, #tpu.memory_space<vmem>>, vector<1x8x128xf32>
    %159 = vector.shape_cast %158 : vector<1x8x128xf32> to vector<8x128xf32>
    %160 = vector.shape_cast %157 : vector<8x128xf32> to vector<1x8x128xf32>
    tpu.vector_store %arg6[%c0_60, %c64, %c0_61], %160 {strides = array<i32>} : memref<1x104x128xf32, #tpu.memory_space<vmem>>, vector<1x8x128xf32>,
    %161 = vector.shape_cast %149 : vector<16x128xf32> to vector<2x8x128xf32>
    %cst_62 = arith.constant dense<0.000000e+00> : vector<8x128xf32>
    %162 = vector.multi_reduction <add>, %161, %cst_62 [0] : vector<2x8x128xf32> to vector<8x128xf32>
    %c0_63 = arith.constant 0 : index
    %c72 = arith.constant 72 : index
    %c0_64 = arith.constant 0 : index
    %163 = vector.load %arg6[%c0_63, %c72, %c0_64] : memref<1x104x128xf32, #tpu.memory_space<vmem>>, vector<1x8x128xf32>
    %164 = vector.shape_cast %163 : vector<1x8x128xf32> to vector<8x128xf32>
    %165 = vector.shape_cast %162 : vector<8x128xf32> to vector<1x8x128xf32>
    tpu.vector_store %arg6[%c0_63, %c72, %c0_64], %165 {strides = array<i32>} : memref<1x104x128xf32, #tpu.memory_space<vmem>>, vector<1x8x128xf32>,
    %c0_65 = arith.constant 0 : index
    %c0_66 = arith.constant 0 : index
    %166 = vector.load %arg4[%c0_65, %c0_66] : memref<16x128xf32, #tpu.memory_space<vmem>>, vector<16x128xf32>
    %167 = arith.subf %166, %0 : vector<16x128xf32>
    %cst_67 = arith.constant 0.000000e+00 : f32
    %168 = vector.broadcast %cst_67 : f32 to vector<16x128xf32>
    %169 = arith.select %2, %167, %168 : vector<16x128xi1>, vector<16x128xf32>
    %c1_i32_68 = arith.constant 1 : i32
    %170 = tpu.dynamic_rotate %169 by %c1_i32_68 dim 1 : vector<16x128xf32>, i32 -> vector<16x128xf32>
    %171 = arith.mulf %170, %9 : vector<16x128xf32>
    %c127_i32_69 = arith.constant 127 : i32
    %172 = tpu.dynamic_rotate %169 by %c127_i32_69 dim 1 : vector<16x128xf32>, i32 -> vector<16x128xf32>
    %173 = arith.mulf %172, %13 : vector<16x128xf32>
    %174 = arith.subf %171, %173 : vector<16x128xf32>
    %cst_70 = arith.constant 2.000000e+00 : f32
    %175 = vector.broadcast %cst_70 : f32 to vector<16x128xf32>
    %176 = arith.mulf %175, %169 : vector<16x128xf32>
    %177 = arith.addf %171, %176 : vector<16x128xf32>
    %178 = arith.addf %177, %173 : vector<16x128xf32>
    %c1_i32_71 = arith.constant 1 : i32
    %179 = tpu.dynamic_rotate %174 by %c1_i32_71 dim 0 : vector<16x128xf32>, i32 -> vector<16x128xf32>
    %180 = arith.mulf %179, %18 : vector<16x128xf32>
    %c15_i32_72 = arith.constant 15 : i32
    %181 = tpu.dynamic_rotate %174 by %c15_i32_72 dim 0 : vector<16x128xf32>, i32 -> vector<16x128xf32>
    %182 = arith.mulf %181, %22 : vector<16x128xf32>
    %c1_i32_73 = arith.constant 1 : i32
    %183 = tpu.dynamic_rotate %178 by %c1_i32_73 dim 0 : vector<16x128xf32>, i32 -> vector<16x128xf32>
    %184 = arith.mulf %183, %18 : vector<16x128xf32>
    %c15_i32_74 = arith.constant 15 : i32
    %185 = tpu.dynamic_rotate %178 by %c15_i32_74 dim 0 : vector<16x128xf32>, i32 -> vector<16x128xf32>
    %186 = arith.mulf %185, %22 : vector<16x128xf32>
    %cst_75 = arith.constant 2.000000e+00 : f32
    %187 = vector.broadcast %cst_75 : f32 to vector<16x128xf32>
    %188 = arith.mulf %187, %174 : vector<16x128xf32>
    %189 = arith.addf %180, %188 : vector<16x128xf32>
    %190 = arith.addf %189, %182 : vector<16x128xf32>
    %191 = arith.subf %184, %186 : vector<16x128xf32>
    %192 = math.absf %190 : vector<16x128xf32>
    %193 = math.absf %191 : vector<16x128xf32>
    %194 = arith.addf %192, %193 : vector<16x128xf32>
    %195 = arith.mulf %194, %4 : vector<16x128xf32>
    %196 = vector.shape_cast %169 : vector<16x128xf32> to vector<2x8x128xf32>
    %cst_76 = arith.constant dense<0.000000e+00> : vector<8x128xf32>
    %197 = vector.multi_reduction <add>, %196, %cst_76 [0] : vector<2x8x128xf32> to vector<8x128xf32>
    %c0_77 = arith.constant 0 : index
    %c80 = arith.constant 80 : index
    %c0_78 = arith.constant 0 : index
    %198 = vector.load %arg6[%c0_77, %c80, %c0_78] : memref<1x104x128xf32, #tpu.memory_space<vmem>>, vector<1x8x128xf32>
    %199 = vector.shape_cast %198 : vector<1x8x128xf32> to vector<8x128xf32>
    %200 = vector.shape_cast %197 : vector<8x128xf32> to vector<1x8x128xf32>
    tpu.vector_store %arg6[%c0_77, %c80, %c0_78], %200 {strides = array<i32>} : memref<1x104x128xf32, #tpu.memory_space<vmem>>, vector<1x8x128xf32>,
    %201 = arith.mulf %169, %169 : vector<16x128xf32>
    %202 = vector.shape_cast %201 : vector<16x128xf32> to vector<2x8x128xf32>
    %cst_79 = arith.constant dense<0.000000e+00> : vector<8x128xf32>
    %203 = vector.multi_reduction <add>, %202, %cst_79 [0] : vector<2x8x128xf32> to vector<8x128xf32>
    %c0_80 = arith.constant 0 : index
    %c88 = arith.constant 88 : index
    %c0_81 = arith.constant 0 : index
    %204 = vector.load %arg6[%c0_80, %c88, %c0_81] : memref<1x104x128xf32, #tpu.memory_space<vmem>>, vector<1x8x128xf32>
    %205 = vector.shape_cast %204 : vector<1x8x128xf32> to vector<8x128xf32>
    %206 = vector.shape_cast %203 : vector<8x128xf32> to vector<1x8x128xf32>
    tpu.vector_store %arg6[%c0_80, %c88, %c0_81], %206 {strides = array<i32>} : memref<1x104x128xf32, #tpu.memory_space<vmem>>, vector<1x8x128xf32>,
    %207 = vector.shape_cast %195 : vector<16x128xf32> to vector<2x8x128xf32>
    %cst_82 = arith.constant dense<0.000000e+00> : vector<8x128xf32>
    %208 = vector.multi_reduction <add>, %207, %cst_82 [0] : vector<2x8x128xf32> to vector<8x128xf32>
    %c0_83 = arith.constant 0 : index
    %c96 = arith.constant 96 : index
    %c0_84 = arith.constant 0 : index
    %209 = vector.load %arg6[%c0_83, %c96, %c0_84] : memref<1x104x128xf32, #tpu.memory_space<vmem>>, vector<1x8x128xf32>
    %210 = vector.shape_cast %209 : vector<1x8x128xf32> to vector<8x128xf32>
    %211 = vector.shape_cast %208 : vector<8x128xf32> to vector<1x8x128xf32>
    tpu.vector_store %arg6[%c0_83, %c96, %c0_84], %211 {strides = array<i32>} : memref<1x104x128xf32, #tpu.memory_space<vmem>>, vector<1x8x128xf32>,
    return
  }
  func.func @transform_0(%arg0: i32) -> (i32, i32) {
    %c0_i32 = arith.constant 0 : i32
    %c0_i32_0 = arith.constant 0 : i32
    return %arg0, %c0_i32 : i32, i32
  }
  func.func @transform_1(%arg0: i32) -> (i32, i32) {
    %c0_i32 = arith.constant 0 : i32
    %c0_i32_0 = arith.constant 0 : i32
    return %arg0, %c0_i32 : i32, i32
  }
  func.func @transform_2(%arg0: i32) -> (i32, i32) {
    %c0_i32 = arith.constant 0 : i32
    %c0_i32_0 = arith.constant 0 : i32
    return %arg0, %c0_i32 : i32, i32
  }
  func.func @transform_3(%arg0: i32) -> (i32, i32) {
    %c0_i32 = arith.constant 0 : i32
    %c0_i32_0 = arith.constant 0 : i32
    return %arg0, %c0_i32 : i32, i32
  }
  func.func @transform_4(%arg0: i32) -> (i32, i32) {
    %c0_i32 = arith.constant 0 : i32
    %c0_i32_0 = arith.constant 0 : i32
    return %arg0, %c0_i32 : i32, i32
  }
  func.func @transform_5(%arg0: i32) -> (i32, i32, i32) {
    %c0_i32 = arith.constant 0 : i32
    %c0_i32_0 = arith.constant 0 : i32
    %c0_i32_1 = arith.constant 0 : i32
    return %arg0, %c0_i32, %c0_i32_0 : i32, i32, i32
  }
}

</mosaic_0001>

<llo_original>
// kernel: tpu_custom_call.1
$region0: #{tpu_custom_call.1}
  #allocation0 [shape = 'u32[]', space=smem, size = 0x4, offset = 0x4, fixed_abs, tag = 'smem constant byte address 0x4 - core index']
  #allocation1 [shape = 'u32[144,128]{1,0:T(1,128)}', space=vmem, size = 0x12000, scoped, tag = 'internal scratch']
  %s0 = inlined_call_operand.hbm [shape: f32[32,128], index: 0, kind: input, shape index: {}]
  %s1 = inlined_call_operand.hbm [shape: f32[32,128], index: 1, kind: input, shape index: {}]
  %s2 = inlined_call_operand.hbm [shape: f32[32,128], index: 2, kind: input, shape index: {}]
  %s3 = inlined_call_operand.hbm [shape: f32[32,128], index: 3, kind: input, shape index: {}]
  %s4 = inlined_call_operand.hbm [shape: f32[32,128], index: 4, kind: input, shape index: {}]
  %s5 = inlined_call_operand.hbm [shape: f32[2,104,128], index: 5, kind: output, shape index: {}]
  %s6 = sld [smem:[#allocation0]]
  $region73: #{tpu_custom_call.1} parent=0
    _
  %s8 = ssub.s32 1, %s6
  %s9 = scalar_select 0, %s8, %s6
  $region1: #{tpu_custom_call.1} parent=0
    #allocation2 [shape = 'u8[16384]{0}', space=vmem, size = 0x4000, scoped, tag = 'input window, operand 0']
    #allocation3 [shape = 's32[2]{0}', space=sflag, size = 0x8, scoped, tag = 'scoped memory for tpu_custom_call.1']
    #allocation4 [shape = 's32[2]{0}', space=sflag, size = 0x8, scoped, tag = 'scoped memory for tpu_custom_call.1']
    #allocation5 [shape = 'u8[16384]{0}', space=vmem, size = 0x4000, scoped, tag = 'input window, operand 1']
    #allocation6 [shape = 's32[2]{0}', space=sflag, size = 0x8, scoped, tag = 'scoped memory for tpu_custom_call.1']
    #allocation7 [shape = 'u8[16384]{0}', space=vmem, size = 0x4000, scoped, tag = 'input window, operand 2']
    #allocation8 [shape = 'u8[16384]{0}', space=vmem, size = 0x4000, scoped, tag = 'input window, operand 3']
    #allocation9 [shape = 's32[2]{0}', space=sflag, size = 0x8, scoped, tag = 'scoped memory for tpu_custom_call.1']
    #allocation10 [shape = 'u8[16384]{0}', space=vmem, size = 0x4000, scoped, tag = 'input window, operand 4']
    #allocation11 [shape = 'u8[106496]{0}', space=vmem, size = 0x1a000, scoped, tag = 'output window, operand 0']
    %10 = vsyncpa [#allocation3], 0
    %s11 = scalar_lea.sflag [#allocation3], 1
    %12 = vsyncpa %s11, 0
    %13 = vsyncpa [#allocation6], 0
    %s14 = scalar_lea.sflag [#allocation6], 1
    %15 = vsyncpa %s14, 0
    %16 = vsyncpa [#allocation9], 0
    %s17 = scalar_lea.sflag [#allocation9], 1
    %18 = vsyncpa %s17, 0
    %19 = vsyncpa [#allocation4], 0
    %s20 = scalar_lea.sflag [#allocation4], 1
    %21 = vsyncpa %s20, 0
    loop: start=0, step=1, limit=4
    $region2: #{tpu_custom_call.1} parent=1 // loop_pre_header
      _
    $region3: #{tpu_custom_call.1} parent=1 // loop_header
      %s23 = sphi 0, %s27
      %p24 = scmp.ge.s32.totalorder %s23, 4
      %s33 = sphi 0, %s35
      %s36 = sphi 0, %s33
      %s37 = sphi 0, %s36
      %s53 = sphi 0, %s37
      %s59 = sphi 0, %s61
      %s62 = sphi 0, %s59
      %s63 = sphi 0, %s62
      %s79 = sphi 0, %s63
      %s85 = sphi 0, %s87
      %s88 = sphi 0, %s85
      %s89 = sphi 0, %s88
      %s105 = sphi 0, %s89
      %s111 = sphi 0, %s113
      %s114 = sphi 0, %s111
      %s115 = sphi 0, %s114
      %s131 = sphi 0, %s115
      %s137 = sphi 0, %s139
      %s140 = sphi 0, %s137
      %s141 = sphi 0, %s140
      %s157 = sphi 0, %s141
      %s163 = sphi 0, %s165
      %s166 = sphi 0, %s163
      %s167 = sphi 0, %s166
      %s183 = sphi 0, %s167
    $region4: #{tpu_custom_call.1} parent=1 // loop_header_branch
      %26 = sbr.rel (%p24) target = $region8
    $region5: #{tpu_custom_call.1} parent=1 // loop_body
      %s28 = ssub.s32 %s23, 1
      %s29 = ssub.s32 %s23, 2
      %s30 = sadd.s32 %s23, 1
      %s31 = ssub.s32 %s23, %s30
      %p32 = scmp.eq.s32.totalorder %s31, 0
      %s34 = sadd.s32 %s33, 1
      %s35 = scalar_select %p32, %s33, %s34
      %p38 = pneg %p32
      %p39 = scmp.eq.s32.totalorder %s23, 1
      %p40 = por %p38, %p39
      %p41 = scmp.ne.s32.totalorder %s33, %s36
      %p42 = scmp.eq.s32.totalorder %s23, 0
      %p43 = por %p41, %p42
      %p44 = scmp.ne.s32.totalorder %s33, %s36
      %p45 = scmp.eq.s32.totalorder %s28, 1
      %p46 = por %p44, %p45
      %p47 = scmp.ne.s32.totalorder %s36, %s37
      %p48 = scmp.eq.s32.totalorder %s28, 0
      %p49 = por %p47, %p48
      %p50 = scmp.ne.s32.totalorder %s36, %s37
      %p51 = scmp.eq.s32.totalorder %s29, 1
      %p52 = por %p50, %p51
      %p54 = scmp.ne.s32.totalorder %s37, %s53
      %p55 = scmp.eq.s32.totalorder %s29, 0
      %p56 = por %p54, %p55
      %s57 = ssub.s32 %s23, %s30
      %p58 = scmp.eq.s32.totalorder %s57, 0
      %s60 = sadd.s32 %s59, 1
      %s61 = scalar_select %p58, %s59, %s60
      %p64 = pneg %p58
      %p65 = scmp.eq.s32.totalorder %s23, 1
      %p66 = por %p64, %p65
      %p67 = scmp.ne.s32.totalorder %s59, %s62
      %p68 = scmp.eq.s32.totalorder %s23, 0
      %p69 = por %p67, %p68
      %p70 = scmp.ne.s32.totalorder %s59, %s62
      %p71 = scmp.eq.s32.totalorder %s28, 1
      %p72 = por %p70, %p71
      %p73 = scmp.ne.s32.totalorder %s62, %s63
      %p74 = scmp.eq.s32.totalorder %s28, 0
      %p75 = por %p73, %p74
      %p76 = scmp.ne.s32.totalorder %s62, %s63
      %p77 = scmp.eq.s32.totalorder %s29, 1
      %p78 = por %p76, %p77
      %p80 = scmp.ne.s32.totalorder %s63, %s79
      %p81 = scmp.eq.s32.totalorder %s29, 0
      %p82 = por %p80, %p81
      %s83 = ssub.s32 %s23, %s30
      %p84 = scmp.eq.s32.totalorder %s83, 0
      %s86 = sadd.s32 %s85, 1
      %s87 = scalar_select %p84, %s85, %s86
      %p90 = pneg %p84
      %p91 = scmp.eq.s32.totalorder %s23, 1
      %p92 = por %p90, %p91
      %p93 = scmp.ne.s32.totalorder %s85, %s88
      %p94 = scmp.eq.s32.totalorder %s23, 0
      %p95 = por %p93, %p94
      %p96 = scmp.ne.s32.totalorder %s85, %s88
      %p97 = scmp.eq.s32.totalorder %s28, 1
      %p98 = por %p96, %p97
      %p99 = scmp.ne.s32.totalorder %s88, %s89
      %p100 = scmp.eq.s32.totalorder %s28, 0
      %p101 = por %p99, %p100
      %p102 = scmp.ne.s32.totalorder %s88, %s89
      %p103 = scmp.eq.s32.totalorder %s29, 1
      %p104 = por %p102, %p103
      %p106 = scmp.ne.s32.totalorder %s89, %s105
      %p107 = scmp.eq.s32.totalorder %s29, 0
      %p108 = por %p106, %p107
      %s109 = ssub.s32 %s23, %s30
      %p110 = scmp.eq.s32.totalorder %s109, 0
      %s112 = sadd.s32 %s111, 1
      %s113 = scalar_select %p110, %s111, %s112
      %p116 = pneg %p110
      %p117 = scmp.eq.s32.totalorder %s23, 1
      %p118 = por %p116, %p117
      %p119 = scmp.ne.s32.totalorder %s111, %s114
      %p120 = scmp.eq.s32.totalorder %s23, 0
      %p121 = por %p119, %p120
      %p122 = scmp.ne.s32.totalorder %s111, %s114
      %p123 = scmp.eq.s32.totalorder %s28, 1
      %p124 = por %p122, %p123
      %p125 = scmp.ne.s32.totalorder %s114, %s115
      %p126 = scmp.eq.s32.totalorder %s28, 0
      %p127 = por %p125, %p126
      %p128 = scmp.ne.s32.totalorder %s114, %s115
      %p129 = scmp.eq.s32.totalorder %s29, 1
      %p130 = por %p128, %p129
      %p132 = scmp.ne.s32.totalorder %s115, %s131
      %p133 = scmp.eq.s32.totalorder %s29, 0
      %p134 = por %p132, %p133
      %s135 = ssub.s32 %s23, %s30
      %p136 = scmp.eq.s32.totalorder %s135, 0
      %s138 = sadd.s32 %s137, 1
      %s139 = scalar_select %p136, %s137, %s138
      %p142 = pneg %p136
      %p143 = scmp.eq.s32.totalorder %s23, 1
      %p144 = por %p142, %p143
      %p145 = scmp.ne.s32.totalorder %s137, %s140
      %p146 = scmp.eq.s32.totalorder %s23, 0
      %p147 = por %p145, %p146
      %p148 = scmp.ne.s32.totalorder %s137, %s140
      %p149 = scmp.eq.s32.totalorder %s28, 1
      %p150 = por %p148, %p149
      %p151 = scmp.ne.s32.totalorder %s140, %s141
      %p152 = scmp.eq.s32.totalorder %s28, 0
      %p153 = por %p151, %p152
      %p154 = scmp.ne.s32.totalorder %s140, %s141
      %p155 = scmp.eq.s32.totalorder %s29, 1
      %p156 = por %p154, %p155
      %p158 = scmp.ne.s32.totalorder %s141, %s157
      %p159 = scmp.eq.s32.totalorder %s29, 0
      %p160 = por %p158, %p159
      %s161 = ssub.s32 %s23, %s30
      %p162 = scmp.eq.s32.totalorder %s161, 0
      %s164 = sadd.s32 %s163, 1
      %s165 = scalar_select %p162, %s163, %s164
      %p168 = pneg %p162
      %p169 = scmp.eq.s32.totalorder %s23, 1
      %p170 = por %p168, %p169
      %p171 = scmp.ne.s32.totalorder %s163, %s166
      %p172 = scmp.eq.s32.totalorder %s23, 0
      %p173 = por %p171, %p172
      %p174 = scmp.ne.s32.totalorder %s163, %s166
      %p175 = scmp.eq.s32.totalorder %s28, 1
      %p176 = por %p174, %p175
      %p177 = scmp.ne.s32.totalorder %s166, %s167
      %p178 = scmp.eq.s32.totalorder %s28, 0
      %p179 = por %p177, %p178
      %p180 = scmp.ne.s32.totalorder %s166, %s167
      %p181 = scmp.eq.s32.totalorder %s29, 1
      %p182 = por %p180, %p181
      %p184 = scmp.ne.s32.totalorder %s167, %s183
      %p185 = scmp.eq.s32.totalorder %s29, 0
      %p186 = por %p184, %p185
      %p187 = scmp.le.s32.totalorder 1, %s23
      %p188 = scmp.lt.s32.totalorder %s23, 3
      %p189 = pnand %p187, %p188
      %p190 = pneg %p189
      // Predicated region
      $region9: #{tpu_custom_call.1} parent=5 // pred_check
        _
      $region10: #{tpu_custom_call.1} parent=5 // pred_check_branch
        %192 = sbr.rel (%p189) target = $region12
      $region11: #{tpu_custom_call.1} parent=5 // pred_region
        %s193 = ssub.s32 %s23, 1
      $region12: #{tpu_custom_call.1} parent=5 // pred_fallthru
        _
      %p194 = scmp.lt.s32.totalorder %s23, 2
      // Predicated region
      $region13: #{tpu_custom_call.1} parent=5 // pred_check
        %p195 = pneg %p194
      $region14: #{tpu_custom_call.1} parent=5 // pred_check_branch
        %197 = sbr.rel (%p195) target = $region16
      $region15: #{tpu_custom_call.1} parent=5 // pred_region
        // Predicated region
        $region17: #{tpu_custom_call.1} parent=15 // pred_check
          %p198 = pneg %p43
        $region18: #{tpu_custom_call.1} parent=15 // pred_check_branch
          %200 = sbr.rel (%p198) target = $region20
        $region19: #{tpu_custom_call.1} parent=15 // pred_region
          %s201 = sand.u32 %s33, 1
          %s202 = scalar_lea.sflag [#allocation3], %s201
          %s203 = sand.u32 %s33, 1
          %s204 = smul.addr %s203, 16
          %s205 = scalar_lea.vmem [#allocation2], %s204
          %s206 = smul.u32 2, %s23
          %s208 = ssub.s32 256, 256
          %209 = vsyncadd %s202, %s208
          %s210 = smul.addr %s206, 128
          %s211 = scalar_lea.hbm %s0, %s210
          %s212 = sshll.u32 %s205, 4
          %s213 = int_to_ptr.vmem [resolvable:$true] %s212
          %218 = dma.hbm_to_vmem [thread:$0]  %s211, 256, %s213, %s202, 128, 128, 8
        $region20: #{tpu_custom_call.1} parent=15 // pred_fallthru
          _
        // Predicated region
        $region21: #{tpu_custom_call.1} parent=15 // pred_check
          %p219 = pneg %p69
        $region22: #{tpu_custom_call.1} parent=15 // pred_check_branch
          %221 = sbr.rel (%p219) target = $region24
        $region23: #{tpu_custom_call.1} parent=15 // pred_region
          %s222 = sand.u32 %s23, 1
          %s223 = scalar_lea.sflag [#allocation6], %s222
          %s224 = sand.u32 %s59, 1
          %s225 = smul.addr %s224, 16
          %s226 = scalar_lea.vmem [#allocation5], %s225
          %s227 = smul.u32 2, %s23
          %s229 = ssub.s32 256, 256
          %230 = vsyncadd %s223, %s229
          %s231 = smul.addr %s227, 128
          %s232 = scalar_lea.hbm %s1, %s231
          %s233 = sshll.u32 %s226, 4
          %s234 = int_to_ptr.vmem [resolvable:$true] %s233
          %239 = dma.hbm_to_vmem [thread:$0]  %s232, 256, %s234, %s223, 128, 128, 8
        $region24: #{tpu_custom_call.1} parent=15 // pred_fallthru
          _
        // Predicated region
        $region25: #{tpu_custom_call.1} parent=15 // pred_check
          %p240 = pneg %p95
        $region26: #{tpu_custom_call.1} parent=15 // pred_check_branch
          %242 = sbr.rel (%p240) target = $region28
        $region27: #{tpu_custom_call.1} parent=15 // pred_region
          %s243 = sand.u32 %s23, 1
          %s244 = scalar_lea.sflag [#allocation6], %s243
          %s245 = sand.u32 %s85, 1
          %s246 = smul.addr %s245, 16
          %s247 = scalar_lea.vmem [#allocation7], %s246
          %s248 = smul.u32 2, %s23
          %s250 = ssub.s32 256, 256
          %251 = vsyncadd %s244, %s250
          %s252 = smul.addr %s248, 128
          %s253 = scalar_lea.hbm %s2, %s252
          %s254 = sshll.u32 %s247, 4
          %s255 = int_to_ptr.vmem [resolvable:$true] %s254
          %260 = dma.hbm_to_vmem [thread:$0]  %s253, 256, %s255, %s244, 128, 128, 8
        $region28: #{tpu_custom_call.1} parent=15 // pred_fallthru
          _
        // Predicated region
        $region29: #{tpu_custom_call.1} parent=15 // pred_check
          %p261 = pneg %p121
        $region30: #{tpu_custom_call.1} parent=15 // pred_check_branch
          %263 = sbr.rel (%p261) target = $region32
        $region31: #{tpu_custom_call.1} parent=15 // pred_region
          %s264 = sand.u32 %s23, 1
          %s265 = scalar_lea.sflag [#allocation9], %s264
          %s266 = sand.u32 %s111, 1
          %s267 = smul.addr %s266, 16
          %s268 = scalar_lea.vmem [#allocation8], %s267
          %s269 = smul.u32 2, %s23
          %s271 = ssub.s32 256, 256
          %272 = vsyncadd %s265, %s271
          %s273 = smul.addr %s269, 128
          %s274 = scalar_lea.hbm %s3, %s273
          %s275 = sshll.u32 %s268, 4
          %s276 = int_to_ptr.vmem [resolvable:$true] %s275
          %281 = dma.hbm_to_vmem [thread:$0]  %s274, 256, %s276, %s265, 128, 128, 8
        $region32: #{tpu_custom_call.1} parent=15 // pred_fallthru
          _
        // Predicated region
        $region33: #{tpu_custom_call.1} parent=15 // pred_check
          %p282 = pneg %p147
        $region34: #{tpu_custom_call.1} parent=15 // pred_check_branch
          %284 = sbr.rel (%p282) target = $region36
        $region35: #{tpu_custom_call.1} parent=15 // pred_region
          %s285 = sand.u32 %s23, 1
          %s286 = scalar_lea.sflag [#allocation9], %s285
          %s287 = sand.u32 %s137, 1
          %s288 = smul.addr %s287, 16
          %s289 = scalar_lea.vmem [#allocation10], %s288
          %s290 = smul.u32 2, %s23
          %s292 = ssub.s32 256, 256
          %293 = vsyncadd %s286, %s292
          %s294 = smul.addr %s290, 128
          %s295 = scalar_lea.hbm %s4, %s294
          %s296 = sshll.u32 %s289, 4
          %s297 = int_to_ptr.vmem [resolvable:$true] %s296
          %302 = dma.hbm_to_vmem [thread:$0]  %s295, 256, %s297, %s286, 128, 128, 8
        $region36: #{tpu_custom_call.1} parent=15 // pred_fallthru
          _
      $region16: #{tpu_custom_call.1} parent=5 // pred_fallthru
        _
      %p303 = scmp.le.s32.totalorder 1, %s23
      %p304 = scmp.lt.s32.totalorder %s23, 3
      %p305 = pnand %p303, %p304
      %p306 = pneg %p305
      // Predicated region
      $region37: #{tpu_custom_call.1} parent=5 // pred_check
        _
      $region38: #{tpu_custom_call.1} parent=5 // pred_check_branch
        %308 = sbr.rel (%p305) target = $region40
      $region39: #{tpu_custom_call.1} parent=5 // pred_region
        %s309 = ssub.s32 %s23, 1
        %s310 = sand.u32 %s36, 1
        %s311 = scalar_lea.sflag [#allocation3], %s310
        %s312 = sand.u32 %s36, 1
        %s313 = smul.addr %s312, 16
        %s314 = scalar_lea.vmem [#allocation2], %s313
        // Predicated region
        $region41: #{tpu_custom_call.1} parent=39 // pred_check
          %p315 = pneg %p49
        $region42: #{tpu_custom_call.1} parent=39 // pred_check_branch
          %317 = sbr.rel (%p315) target = $region44
        $region43: #{tpu_custom_call.1} parent=39 // pred_region
          %318 = dma.done %s311, 256
        $region44: #{tpu_custom_call.1} parent=39 // pred_fallthru
          _
        %s319 = sand.u32 %s28, 1
        %s320 = scalar_lea.sflag [#allocation6], %s319
        %s321 = sand.u32 %s62, 1
        %s322 = smul.addr %s321, 16
        %s323 = scalar_lea.vmem [#allocation5], %s322
        // Predicated region
        $region45: #{tpu_custom_call.1} parent=39 // pred_check
          %p324 = pneg %p75
        $region46: #{tpu_custom_call.1} parent=39 // pred_check_branch
          %326 = sbr.rel (%p324) target = $region48
        $region47: #{tpu_custom_call.1} parent=39 // pred_region
          %327 = dma.done %s320, 256
        $region48: #{tpu_custom_call.1} parent=39 // pred_fallthru
          _
        %s328 = sand.u32 %s28, 1
        %s329 = scalar_lea.sflag [#allocation6], %s328
        %s330 = sand.u32 %s88, 1
        %s331 = smul.addr %s330, 16
        %s332 = scalar_lea.vmem [#allocation7], %s331
        // Predicated region
        $region49: #{tpu_custom_call.1} parent=39 // pred_check
          %p333 = pneg %p101
        $region50: #{tpu_custom_call.1} parent=39 // pred_check_branch
          %335 = sbr.rel (%p333) target = $region52
        $region51: #{tpu_custom_call.1} parent=39 // pred_region
          %336 = dma.done %s329, 256
        $region52: #{tpu_custom_call.1} parent=39 // pred_fallthru
          _
        %s337 = sand.u32 %s28, 1
        %s338 = scalar_lea.sflag [#allocation9], %s337
        %s339 = sand.u32 %s114, 1
        %s340 = smul.addr %s339, 16
        %s341 = scalar_lea.vmem [#allocation8], %s340
        // Predicated region
        $region53: #{tpu_custom_call.1} parent=39 // pred_check
          %p342 = pneg %p127
        $region54: #{tpu_custom_call.1} parent=39 // pred_check_branch
          %344 = sbr.rel (%p342) target = $region56
        $region55: #{tpu_custom_call.1} parent=39 // pred_region
          %345 = dma.done %s338, 256
        $region56: #{tpu_custom_call.1} parent=39 // pred_fallthru
          _
        %s346 = sand.u32 %s28, 1
        %s347 = scalar_lea.sflag [#allocation9], %s346
        %s348 = sand.u32 %s140, 1
        %s349 = smul.addr %s348, 16
        %s350 = scalar_lea.vmem [#allocation10], %s349
        // Predicated region
        $region57: #{tpu_custom_call.1} parent=39 // pred_check
          %p351 = pneg %p153
        $region58: #{tpu_custom_call.1} parent=39 // pred_check_branch
          %353 = sbr.rel (%p351) target = $region60
        $region59: #{tpu_custom_call.1} parent=39 // pred_region
          %354 = dma.done %s347, 256
        $region60: #{tpu_custom_call.1} parent=39 // pred_fallthru
          _
        %s355 = sand.u32 %s36, 1
        %s356 = scalar_lea.sflag [#allocation3], %s355
        %s357 = sand.u32 %s36, 1
        %s358 = smul.addr %s357, 16
        %s359 = scalar_lea.vmem [#allocation2], %s358
        %p360 = pneg %p49
        %p361 = pneg %p46
        %s362 = sand.u32 %s28, 1
        %s363 = scalar_lea.sflag [#allocation6], %s362
        %s364 = sand.u32 %s62, 1
        %s365 = smul.addr %s364, 16
        %s366 = scalar_lea.vmem [#allocation5], %s365
        %p367 = pneg %p75
        %p368 = pneg %p72
        %s369 = sand.u32 %s28, 1
        %s370 = scalar_lea.sflag [#allocation6], %s369
        %s371 = sand.u32 %s88, 1
        %s372 = smul.addr %s371, 16
        %s373 = scalar_lea.vmem [#allocation7], %s372
        %p374 = pneg %p101
        %p375 = pneg %p98
        %s376 = sand.u32 %s28, 1
        %s377 = scalar_lea.sflag [#allocation9], %s376
        %s378 = sand.u32 %s114, 1
        %s379 = smul.addr %s378, 16
        %s380 = scalar_lea.vmem [#allocation8], %s379
        %p381 = pneg %p127
        %p382 = pneg %p124
        %s383 = sand.u32 %s28, 1
        %s384 = scalar_lea.sflag [#allocation9], %s383
        %s385 = sand.u32 %s140, 1
        %s386 = smul.addr %s385, 16
        %s387 = scalar_lea.vmem [#allocation10], %s386
        %p388 = pneg %p153
        %p389 = pneg %p150
        %p390 = pneg %p179
        %p391 = pneg %p176
        %s392 = sand.u32 %s166, 1
        %s393 = scalar_lea.sflag [#allocation4], %s392
        %s394 = sand.u32 %s166, 1
        %s395 = smul.addr %s394, 104
        %s396 = scalar_lea.vmem [#allocation11], %s395
        %s397 = smul.u32 2, %s28
        %s398 = smul.u32 2, %s28
        %s399 = smul.u32 2, %s28
        %s400 = smul.u32 2, %s28
        %s401 = smul.u32 2, %s28
        %v402 = vld [vmem:[%s350] sm:$0xff]
        %v403 = vld [vmem:[%s350 + $0x8] sm:$0xff]
        %vm404 = vcmp.ne.f32.partialorder %v402, %v402
        %vm405 = vcmp.ne.f32.partialorder %v403, %v403
        %vm406 = vmxor %vm404, 1
        %vm407 = vmxor %vm405, 1
        %v408 = vsel %vm406, 1, 0
        %v409 = vsel %vm407, 1, 0
        %v410 = vcvt.s32.f32 %v408
        %v411 = vcvt.s32.f32 %v409
        %v412 = vlaneseq
        %v413 = vand.u32 %v412, 127
        %vm414 = vcmp.gt.s32.totalorder %v413, 0
        %v415 = vsel %vm414, 1, 0
        %v416 = vcvt.s32.f32 %v415
        %vm417 = vcmp.lt.s32.totalorder %v413, 127
        %v418 = vsel %vm417, 1, 0
        %v419 = vcvt.s32.f32 %v418
        %v420 = vlaneseq
        %v421 = vshrl.u32 %v420, 7
        %v422 = vadd.s32 %v421, 8
        %vm423 = vcmp.gt.s32.totalorder %v421, 0
        %vm424 = vcmp.gt.s32.totalorder %v422, 0
        %v425 = vsel %vm423, 1, 0
        %v426 = vsel %vm424, 1, 0
        %v427 = vcvt.s32.f32 %v425
        %v428 = vcvt.s32.f32 %v426
        %vm429 = vcmp.lt.s32.totalorder %v421, 15
        %vm430 = vcmp.lt.s32.totalorder %v422, 15
        %v431 = vsel %vm429, 1, 0
        %v432 = vsel %vm430, 1, 0
        %v433 = vcvt.s32.f32 %v431
        %v434 = vcvt.s32.f32 %v432
        %v435 = vadd.f32 %v410, %v411
        %436 = vst [vmem:[%s396] sm:$0xff] %v435
        %v437 = vld [vmem:[%s314] sm:$0xff]
        %v438 = vld [vmem:[%s314 + $0x8] sm:$0xff]
        %v439 = vsub.f32 %v437, %v402
        %v440 = vsub.f32 %v438, %v403
        %v441 = vsel %vm406, %v439, 0.0
        %v442 = vsel %vm407, %v440, 0.0
        %443 = vrot.lane.b32.xlu0 %v441, 1
        %v444 = vpop.permute.xlu0 %443
        %445 = vrot.lane.b32.xlu0 %v442, 1
        %v446 = vpop.permute.xlu0 %445
        %v447 = vmul.f32 %v444, %v416
        %v448 = vmul.f32 %v446, %v416
        %449 = vrot.lane.b32.xlu0 %v441, 127
        %v450 = vpop.permute.xlu0 %449
        %451 = vrot.lane.b32.xlu0 %v442, 127
        %v452 = vpop.permute.xlu0 %451
        %v453 = vmul.f32 %v450, %v419
        %v454 = vmul.f32 %v452, %v419
        %v455 = vsub.f32 %v447, %v453
        %v456 = vsub.f32 %v448, %v454
        %v457 = vmul.f32 %v441, 2.0
        %v458 = vmul.f32 %v442, 2.0
        %v459 = vadd.f32 %v447, %v457
        %v460 = vadd.f32 %v448, %v458
        %v461 = vadd.f32 %v459, %v453
        %v462 = vadd.f32 %v460, %v454
        %v463 = vrot.slane %v455, 7
        %v464 = vrot.slane %v456, 7
        %vm465 = vcmp.lt.s32.totalorder %v421, 1
        %v466 = vsel %vm465, %v463, %v464
        %v467 = vsel %vm465, %v464, %v463
        %v468 = vmul.f32 %v467, %v427
        %v469 = vmul.f32 %v466, %v428
        %v470 = vrot.slane %v455, 1
        %v471 = vrot.slane %v456, 1
        %vm472 = vcmp.lt.s32.totalorder %v421, 7
        %v473 = vsel %vm472, %v470, %v471
        %v474 = vsel %vm472, %v471, %v470
        %v475 = vmul.f32 %v473, %v433
        %v476 = vmul.f32 %v474, %v434
        %v477 = vrot.slane %v461, 7
        %v478 = vrot.slane %v462, 7
        %v479 = vsel %vm465, %v477, %v478
        %v480 = vsel %vm465, %v478, %v477
        %v481 = vmul.f32 %v480, %v427
        %v482 = vmul.f32 %v479, %v428
        %v483 = vrot.slane %v461, 1
        %v484 = vrot.slane %v462, 1
        %v485 = vsel %vm472, %v483, %v484
        %v486 = vsel %vm472, %v484, %v483
        %v487 = vmul.f32 %v485, %v433
        %v488 = vmul.f32 %v486, %v434
        %v489 = vmul.f32 %v455, 2.0
        %v490 = vmul.f32 %v456, 2.0
        %v491 = vadd.f32 %v468, %v489
        %v492 = vadd.f32 %v469, %v490
        %v493 = vadd.f32 %v491, %v475
        %v494 = vadd.f32 %v492, %v476
        %v495 = vsub.f32 %v481, %v487
        %v496 = vsub.f32 %v482, %v488
        %v497 = vand.u32 2147483647, %v493
        %v498 = vand.u32 2147483647, %v494
        %v499 = vand.u32 2147483647, %v495
        %v500 = vand.u32 2147483647, %v496
        %v501 = vadd.f32 %v497, %v499
        %v502 = vadd.f32 %v498, %v500
        %v503 = vmul.f32 %v501, %v410
        %v504 = vmul.f32 %v502, %v411
        %v505 = vadd.f32 %v441, %v442
        %506 = vst [vmem:[%s396 + $0x8] sm:$0xff] %v505
        %v507 = vmul.f32 %v441, %v441
        %v508 = vmul.f32 %v442, %v442
        %v509 = vadd.f32 %v507, %v508
        %510 = vst [vmem:[%s396 + $0x10] sm:$0xff] %v509
        %v511 = vadd.f32 %v503, %v504
        %512 = vst [vmem:[%s396 + $0x18] sm:$0xff] %v511
        %v513 = vld [vmem:[%s323] sm:$0xff]
        %v514 = vld [vmem:[%s323 + $0x8] sm:$0xff]
        %v515 = vsub.f32 %v513, %v402
        %v516 = vsub.f32 %v514, %v403
        %v517 = vsel %vm406, %v515, 0.0
        %v518 = vsel %vm407, %v516, 0.0
        %519 = vrot.lane.b32.xlu0 %v517, 1
        %v520 = vpop.permute.xlu0 %519
        %521 = vrot.lane.b32.xlu0 %v518, 1
        %v522 = vpop.permute.xlu0 %521
        %v523 = vmul.f32 %v520, %v416
        %v524 = vmul.f32 %v522, %v416
        %525 = vrot.lane.b32.xlu0 %v517, 127
        %v526 = vpop.permute.xlu0 %525
        %527 = vrot.lane.b32.xlu0 %v518, 127
        %v528 = vpop.permute.xlu0 %527
        %v529 = vmul.f32 %v526, %v419
        %v530 = vmul.f32 %v528, %v419
        %v531 = vsub.f32 %v523, %v529
        %v532 = vsub.f32 %v524, %v530
        %v533 = vmul.f32 %v517, 2.0
        %v534 = vmul.f32 %v518, 2.0
        %v535 = vadd.f32 %v523, %v533
        %v536 = vadd.f32 %v524, %v534
        %v537 = vadd.f32 %v535, %v529
        %v538 = vadd.f32 %v536, %v530
        %v539 = vrot.slane %v531, 7
        %v540 = vrot.slane %v532, 7
        %v541 = vsel %vm465, %v539, %v540
        %v542 = vsel %vm465, %v540, %v539
        %v543 = vmul.f32 %v542, %v427
        %v544 = vmul.f32 %v541, %v428
        %v545 = vrot.slane %v531, 1
        %v546 = vrot.slane %v532, 1
        %v547 = vsel %vm472, %v545, %v546
        %v548 = vsel %vm472, %v546, %v545
        %v549 = vmul.f32 %v547, %v433
        %v550 = vmul.f32 %v548, %v434
        %v551 = vrot.slane %v537, 7
        %v552 = vrot.slane %v538, 7
        %v553 = vsel %vm465, %v551, %v552
        %v554 = vsel %vm465, %v552, %v551
        %v555 = vmul.f32 %v554, %v427
        %v556 = vmul.f32 %v553, %v428
        %v557 = vrot.slane %v537, 1
        %v558 = vrot.slane %v538, 1
        %v559 = vsel %vm472, %v557, %v558
        %v560 = vsel %vm472, %v558, %v557
        %v561 = vmul.f32 %v559, %v433
        %v562 = vmul.f32 %v560, %v434
        %v563 = vmul.f32 %v531, 2.0
        %v564 = vmul.f32 %v532, 2.0
        %v565 = vadd.f32 %v543, %v563
        %v566 = vadd.f32 %v544, %v564
        %v567 = vadd.f32 %v565, %v549
        %v568 = vadd.f32 %v566, %v550
        %v569 = vsub.f32 %v555, %v561
        %v570 = vsub.f32 %v556, %v562
        %v571 = vand.u32 2147483647, %v567
        %v572 = vand.u32 2147483647, %v568
        %v573 = vand.u32 2147483647, %v569
        %v574 = vand.u32 2147483647, %v570
        %v575 = vadd.f32 %v571, %v573
        %v576 = vadd.f32 %v572, %v574
        %v577 = vmul.f32 %v575, %v410
        %v578 = vmul.f32 %v576, %v411
        %v579 = vadd.f32 %v517, %v518
        %580 = vst [vmem:[%s396 + $0x20] sm:$0xff] %v579
        %v581 = vmul.f32 %v517, %v517
        %v582 = vmul.f32 %v518, %v518
        %v583 = vadd.f32 %v581, %v582
        %584 = vst [vmem:[%s396 + $0x28] sm:$0xff] %v583
        %v585 = vadd.f32 %v577, %v578
        %586 = vst [vmem:[%s396 + $0x30] sm:$0xff] %v585
        %v587 = vld [vmem:[%s332] sm:$0xff]
        %v588 = vld [vmem:[%s332 + $0x8] sm:$0xff]
        %v589 = vsub.f32 %v587, %v402
        %v590 = vsub.f32 %v588, %v403
        %v591 = vsel %vm406, %v589, 0.0
        %v592 = vsel %vm407, %v590, 0.0
        %593 = vrot.lane.b32.xlu0 %v591, 1
        %v594 = vpop.permute.xlu0 %593
        %595 = vrot.lane.b32.xlu0 %v592, 1
        %v596 = vpop.permute.xlu0 %595
        %v597 = vmul.f32 %v594, %v416
        %v598 = vmul.f32 %v596, %v416
        %599 = vrot.lane.b32.xlu0 %v591, 127
        %v600 = vpop.permute.xlu0 %599
        %601 = vrot.lane.b32.xlu0 %v592, 127
        %v602 = vpop.permute.xlu0 %601
        %v603 = vmul.f32 %v600, %v419
        %v604 = vmul.f32 %v602, %v419
        %v605 = vsub.f32 %v597, %v603
        %v606 = vsub.f32 %v598, %v604
        %v607 = vmul.f32 %v591, 2.0
        %v608 = vmul.f32 %v592, 2.0
        %v609 = vadd.f32 %v597, %v607
        %v610 = vadd.f32 %v598, %v608
        %v611 = vadd.f32 %v609, %v603
        %v612 = vadd.f32 %v610, %v604
        %v613 = vrot.slane %v605, 7
        %v614 = vrot.slane %v606, 7
        %v615 = vsel %vm465, %v613, %v614
        %v616 = vsel %vm465, %v614, %v613
        %v617 = vmul.f32 %v616, %v427
        %v618 = vmul.f32 %v615, %v428
        %v619 = vrot.slane %v605, 1
        %v620 = vrot.slane %v606, 1
        %v621 = vsel %vm472, %v619, %v620
        %v622 = vsel %vm472, %v620, %v619
        %v623 = vmul.f32 %v621, %v433
        %v624 = vmul.f32 %v622, %v434
        %v625 = vrot.slane %v611, 7
        %v626 = vrot.slane %v612, 7
        %v627 = vsel %vm465, %v625, %v626
        %v628 = vsel %vm465, %v626, %v625
        %v629 = vmul.f32 %v628, %v427
        %v630 = vmul.f32 %v627, %v428
        %v631 = vrot.slane %v611, 1
        %v632 = vrot.slane %v612, 1
        %v633 = vsel %vm472, %v631, %v632
        %v634 = vsel %vm472, %v632, %v631
        %v635 = vmul.f32 %v633, %v433
        %v636 = vmul.f32 %v634, %v434
        %v637 = vmul.f32 %v605, 2.0
        %v638 = vmul.f32 %v606, 2.0
        %v639 = vadd.f32 %v617, %v637
        %v640 = vadd.f32 %v618, %v638
        %v641 = vadd.f32 %v639, %v623
        %v642 = vadd.f32 %v640, %v624
        %v643 = vsub.f32 %v629, %v635
        %v644 = vsub.f32 %v630, %v636
        %v645 = vand.u32 2147483647, %v641
        %v646 = vand.u32 2147483647, %v642
        %v647 = vand.u32 2147483647, %v643
        %v648 = vand.u32 2147483647, %v644
        %v649 = vadd.f32 %v645, %v647
        %v650 = vadd.f32 %v646, %v648
        %v651 = vmul.f32 %v649, %v410
        %v652 = vmul.f32 %v650, %v411
        %v653 = vadd.f32 %v591, %v592
        %654 = vst [vmem:[%s396 + $0x38] sm:$0xff] %v653
        %v655 = vmul.f32 %v591, %v591
        %v656 = vmul.f32 %v592, %v592
        %v657 = vadd.f32 %v655, %v656
        %658 = vst [vmem:[%s396 + $0x40] sm:$0xff] %v657
        %v659 = vadd.f32 %v651, %v652
        %660 = vst [vmem:[%s396 + $0x48] sm:$0xff] %v659
        %v661 = vld [vmem:[%s341] sm:$0xff]
        %v662 = vld [vmem:[%s341 + $0x8] sm:$0xff]
        %v663 = vsub.f32 %v661, %v402
        %v664 = vsub.f32 %v662, %v403
        %v665 = vsel %vm406, %v663, 0.0
        %v666 = vsel %vm407, %v664, 0.0
        %667 = vrot.lane.b32.xlu0 %v665, 1
        %v668 = vpop.permute.xlu0 %667
        %669 = vrot.lane.b32.xlu0 %v666, 1
        %v670 = vpop.permute.xlu0 %669
        %v671 = vmul.f32 %v668, %v416
        %v672 = vmul.f32 %v670, %v416
        %673 = vrot.lane.b32.xlu0 %v665, 127
        %v674 = vpop.permute.xlu0 %673
        %675 = vrot.lane.b32.xlu0 %v666, 127
        %v676 = vpop.permute.xlu0 %675
        %v677 = vmul.f32 %v674, %v419
        %v678 = vmul.f32 %v676, %v419
        %v679 = vsub.f32 %v671, %v677
        %v680 = vsub.f32 %v672, %v678
        %v681 = vmul.f32 %v665, 2.0
        %v682 = vmul.f32 %v666, 2.0
        %v683 = vadd.f32 %v671, %v681
        %v684 = vadd.f32 %v672, %v682
        %v685 = vadd.f32 %v683, %v677
        %v686 = vadd.f32 %v684, %v678
        %v687 = vrot.slane %v679, 7
        %v688 = vrot.slane %v680, 7
        %v689 = vsel %vm465, %v687, %v688
        %v690 = vsel %vm465, %v688, %v687
        %v691 = vmul.f32 %v690, %v427
        %v692 = vmul.f32 %v689, %v428
        %v693 = vrot.slane %v679, 1
        %v694 = vrot.slane %v680, 1
        %v695 = vsel %vm472, %v693, %v694
        %v696 = vsel %vm472, %v694, %v693
        %v697 = vmul.f32 %v695, %v433
        %v698 = vmul.f32 %v696, %v434
        %v699 = vrot.slane %v685, 7
        %v700 = vrot.slane %v686, 7
        %v701 = vsel %vm465, %v699, %v700
        %v702 = vsel %vm465, %v700, %v699
        %v703 = vmul.f32 %v702, %v427
        %v704 = vmul.f32 %v701, %v428
        %v705 = vrot.slane %v685, 1
        %v706 = vrot.slane %v686, 1
        %v707 = vsel %vm472, %v705, %v706
        %v708 = vsel %vm472, %v706, %v705
        %v709 = vmul.f32 %v707, %v433
        %v710 = vmul.f32 %v708, %v434
        %v711 = vmul.f32 %v679, 2.0
        %v712 = vmul.f32 %v680, 2.0
        %v713 = vadd.f32 %v691, %v711
        %v714 = vadd.f32 %v692, %v712
        %v715 = vadd.f32 %v713, %v697
        %v716 = vadd.f32 %v714, %v698
        %v717 = vsub.f32 %v703, %v709
        %v718 = vsub.f32 %v704, %v710
        %v719 = vand.u32 2147483647, %v715
        %v720 = vand.u32 2147483647, %v716
        %v721 = vand.u32 2147483647, %v717
        %v722 = vand.u32 2147483647, %v718
        %v723 = vadd.f32 %v719, %v721
        %v724 = vadd.f32 %v720, %v722
        %v725 = vmul.f32 %v723, %v410
        %v726 = vmul.f32 %v724, %v411
        %v727 = vadd.f32 %v665, %v666
        %728 = vst [vmem:[%s396 + $0x50] sm:$0xff] %v727
        %v729 = vmul.f32 %v665, %v665
        %v730 = vmul.f32 %v666, %v666
        %v731 = vadd.f32 %v729, %v730
        %732 = vst [vmem:[%s396 + $0x58] sm:$0xff] %v731
        %v733 = vadd.f32 %v725, %v726
        %734 = vst [vmem:[%s396 + $0x60] sm:$0xff] %v733
        %s735 = sand.u32 %s166, 1
        %s736 = scalar_lea.sflag [#allocation4], %s735
        %s737 = sand.u32 %s166, 1
        %s738 = smul.addr %s737, 104
        %s739 = scalar_lea.vmem [#allocation11], %s738
        // Predicated region
        $region61: #{tpu_custom_call.1} parent=39 // pred_check
          %p740 = pneg %p176
        $region62: #{tpu_custom_call.1} parent=39 // pred_check_branch
          %742 = sbr.rel (%p740) target = $region64
        $region63: #{tpu_custom_call.1} parent=39 // pred_region
          %s744 = ssub.s32 1664, 1664
          %745 = vsyncadd %s736, %s744
          %s746 = smul.addr %s28, 13
          %s747 = smul.addr %s746, 128
          %s748 = scalar_lea.hbm %s5, %s747
          %s749 = sshll.u32 %s739, 4
          %s750 = int_to_ptr.vmem [resolvable:$true] %s749
          %755 = dma.vmem_to_hbm [thread:$0]  %s750, 1664, %s748, %s736, 128, 128, 8
        $region64: #{tpu_custom_call.1} parent=39 // pred_fallthru
          _
      $region40: #{tpu_custom_call.1} parent=5 // pred_fallthru
        _
      %p756 = scmp.le.s32.totalorder 2, %s23
      // Predicated region
      $region65: #{tpu_custom_call.1} parent=5 // pred_check
        %p757 = pneg %p756
      $region66: #{tpu_custom_call.1} parent=5 // pred_check_branch
        %759 = sbr.rel (%p757) target = $region68
      $region67: #{tpu_custom_call.1} parent=5 // pred_region
        %s760 = ssub.s32 %s23, 2
        // Predicated region
        $region69: #{tpu_custom_call.1} parent=67 // pred_check
          %p761 = pneg %p182
        $region70: #{tpu_custom_call.1} parent=67 // pred_check_branch
          %763 = sbr.rel (%p761) target = $region72
        $region71: #{tpu_custom_call.1} parent=67 // pred_region
          %s764 = sand.u32 %s167, 1
          %s765 = scalar_lea.sflag [#allocation4], %s764
          %s766 = sand.u32 %s167, 1
          %s767 = smul.addr %s766, 104
          %s768 = scalar_lea.vmem [#allocation11], %s767
          %769 = dma.done %s765, 1664
        $region72: #{tpu_custom_call.1} parent=67 // pred_fallthru
          _
      $region68: #{tpu_custom_call.1} parent=5 // pred_fallthru
        _
    $region6: #{tpu_custom_call.1} parent=1 // loop_footer
      %s27 = sadd.s32 1, %s23
    $region7: #{tpu_custom_call.1} parent=1 // loop_footer_branch
      %22 = sbr.rel target = $region3
    $region8: #{tpu_custom_call.1} parent=1 // loop_exit
      _
    %770 = vsyncpa [#allocation3], 1
    %s771 = scalar_lea.sflag [#allocation3], 1
    %772 = vsyncpa %s771, 1
    %773 = vsyncpa [#allocation6], 1
    %s774 = scalar_lea.sflag [#allocation6], 1
    %775 = vsyncpa %s774, 1
    %776 = vsyncpa [#allocation9], 1
    %s777 = scalar_lea.sflag [#allocation9], 1
    %778 = vsyncpa %s777, 1
    %779 = vsyncpa [#allocation4], 1
    %s780 = scalar_lea.sflag [#allocation4], 1
    %781 = vsyncpa %s780, 1

</llo_original>
